<compile_context>
chip_gen: v5e
topology: v5e:2x2
jax: 0.10.0
libtpu: 0.0.40
codegen_flags: <defaults>
</compile_context>

<pallas_src>
import jax
import jax.numpy as jnp
from jax.experimental import pallas as pl
from jax.experimental.pallas import tpu as pltpu


# ---------------------------------------------------------------------------
# Kernels
# ---------------------------------------------------------------------------
def _scores_kernel(enc_ref, hid_tiled_ref, w1e_ref, w2_ref, out_ref):
    # enc_ref:       (ts*B, H) compute dtype (f32/bf16)  -- streamed
    # hid_tiled_ref: (ts*B, H) f32  (hid @ W_h^T + b, tiled over ts)  -- resident
    # w1e_ref:       (H, H)    compute dtype              -- resident
    # w2_ref:        (1, H)    f32                        -- resident
    # out_ref:       (B, ts)   f32 block of the (B, S) score matrix
    B, ts = out_ref.shape
    # One large-M MXU matmul per S tile, f32 accumulation.
    proj = jnp.dot(enc_ref[...], w1e_ref[...], preferred_element_type=jnp.float32)
    # S-invariant hidden projection (incl. bias) was hoisted/tiled in the wrapper.
    energy = jnp.tanh(proj + hid_tiled_ref[...])                      # (ts*B, H) f32
    # H -> 1 projection as a VPU multiply + cross-lane (XLU) reduction; keeps the
    # MXU free and avoids an N=1 matmul (these slots have slack when HBM-bound).
    scores = jnp.sum(energy * w2_ref[...], axis=-1, keepdims=True)    # (ts*B, 1)
    # Tiny (ts*B elements) relayout to a lane-dense (B, ts) output block.
    out_ref[...] = jnp.transpose(scores.reshape(ts, B)).astype(out_ref.dtype)


def _softmax_kernel(scores_ref, out_ref):
    s = scores_ref[...].astype(jnp.float32)                           # (tb, S)
    m = jnp.max(s, axis=-1, keepdims=True)
    e = jnp.exp(s - m)
    out_ref[...] = (e / jnp.sum(e, axis=-1, keepdims=True)).astype(out_ref.dtype)


# ---------------------------------------------------------------------------
# Tiling / VMEM budgeting helpers
# ---------------------------------------------------------------------------
def _vmem_capacity_bytes():
    """Per-TensorCore VMEM capacity; conservative fallback = v7x (64 MiB/TC)."""
    try:
        return int(pltpu.get_tpu_info().vmem_capacity_bytes)
    except Exception:
        return 64 * 1024 * 1024


def _canonical_tile(ts, S):
    """Force ts to be == S (full dim) or a multiple of 128 (lane-dense, legal)."""
    if ts >= S:
        return S
    ts = (ts // 128) * 128
    if ts == 0:
        return min(S, 128)
    return ts


def _choose_seq_tile(S, B, H, enc_itemsize, budget_bytes):
    """Max sequence rows per tile under budget (conservative: everything x2 buffers)."""
    per_row = B * H * (2 * enc_itemsize + 2 * 4) + 2 * B * 4
    return max(1, min(S, budget_bytes // per_row))


def _choose_batch_tile(B, S, budget_bytes=4 * 1024 * 1024):
    max_tb = max(1, budget_bytes // max(1, S * 4 * 4))
    if B <= max_tb:
        return B
    return min(B, max(8, (max_tb // 8) * 8))


# ---------------------------------------------------------------------------
# Pass 1: scores
# ---------------------------------------------------------------------------
def _scores_pass(enc2d, hid_tiled, w1e, w2_row, B, S, H, ts,
                 vmem_limit_bytes, cost, single_buffer_invariants):
    tsB = ts * B

    def _const_spec(block_shape):
        index_map = lambda s, _n=len(block_shape): (0,) * _n
        if single_buffer_invariants:
            # Grid-invariant operands: one VMEM buffer is enough.
            return pl.BlockSpec(block_shape, index_map, pipeline_mode=pl.Buffered(1))
        return pl.BlockSpec(block_shape, index_map)

    return pl.pallas_call(
        _scores_kernel,
        out_shape=jax.ShapeDtypeStruct((B, S), jnp.float32),
        grid_spec=pltpu.PrefetchScalarGridSpec(
            num_scalar_prefetch=0,
            grid=(pl.cdiv(S, ts),),                              # masked edge block OK
            in_specs=[
                pl.BlockSpec((tsB, H), lambda s: (s, 0)),        # enc (streamed)
                _const_spec((tsB, H)),                           # hid_pre, tiled
                _const_spec((H, H)),                             # W_e
                _const_spec((1, H)),                             # w2 row
            ],
            out_specs=pl.BlockSpec((B, ts), lambda s: (0, s)),   # lane-dense block
        ),
        compiler_params=pltpu.CompilerParams(
            dimension_semantics=("parallel",),                   # megacore shard on v7x
            vmem_limit_bytes=int(vmem_limit_bytes),
        ),
        cost_estimate=cost,
    )(enc2d, hid_tiled, w1e, w2_row)


# ---------------------------------------------------------------------------
# Public wrapper
# ---------------------------------------------------------------------------
def attention_forward(hidden, encoder_outputs, w1, b1, w2,
                      compute_dtype=jnp.float32, max_seq_tile=None):
    """
    hidden:           (1, B, H)  float32
    encoder_outputs:  (S, B, H)  float32 (or bf16 for the fast path)
    w1: (H, 2H)  attention_hidden.weight  (PyTorch layout: out_features x in_features)
    b1: (H,)     attention_hidden.bias
    w2: (1, H)   attention_score.weight (no bias)
    compute_dtype: dtype fed to the big (S*B, H) x (H, H) MXU matmul.  bf16 halves
                   the streamed HBM bytes (accumulation/epilogue stay f32) but only
                   pays off if encoder_outputs arrives bf16 / the cast fuses upstream.
    max_seq_tile:  optional cap on the sequence tile (testing knob).
    returns: (B, S) softmax attention weights, float32
    """
    S, B, H = encoder_outputs.shape
    compute_dtype = jnp.dtype(compute_dtype)
    enc_itemsize = compute_dtype.itemsize

    hid = hidden[0]                                               # (B, H)

    # Split the concat-linear:
    #   [hid, enc] @ W1^T + b1 = hid @ W1[:, :H]^T + enc @ W1[:, H:]^T + b1
    w1h = jnp.transpose(w1[:, :H]).astype(jnp.float32)            # (H, H), tiny
    w1e = jnp.transpose(w1[:, H:])                                # (H, H)
    w2_row = w2.reshape(1, H).astype(jnp.float32)                 # (1, H)

    # S-invariant piece (hidden projection + bias), hoisted out of the S loop.
    hid_pre = (jnp.dot(hid.astype(jnp.float32), w1h,
                       preferred_element_type=jnp.float32)
               + b1[None, :].astype(jnp.float32))                 # (B, H) f32

    # encoder_outputs stays in native (S, B, H) HBM layout; reshaping a
    # contiguous array to (S*B, H) is metadata-only (no copy, no repack).
    enc2d = encoder_outputs.reshape(S * B, H)
    if compute_dtype != jnp.dtype(encoder_outputs.dtype):
        enc2d = enc2d.astype(compute_dtype)
        w1e = w1e.astype(compute_dtype)

    # Generation-aware VMEM budgeting (64 MiB/TC on v7x, 128 MiB on v5e/v6e).
    vmem_cap = _vmem_capacity_bytes()
    vmem_limit = min((vmem_cap * 3) // 4, 112 * 1024 * 1024)
    fixed = 2 * H * H * enc_itemsize + 4 * H * 4 + (2 << 20)      # weights + slack
    budget = max(1 << 20, vmem_limit - fixed)

    ts = _canonical_tile(_choose_seq_tile(S, B, H, enc_itemsize, budget), S)
    if max_seq_tile is not None:
        ts = _canonical_tile(min(ts, int(max_seq_tile)), S)

    # Tiled copy of the S-invariant term: loaded once per core, stays resident.
    hid_tiled = jnp.tile(hid_pre, (ts, 1))                        # (ts*B, H) f32

    cost = pl.CostEstimate(
        flops=2 * S * B * H * H + 3 * S * B * H,
        transcendentals=S * B * H,
        bytes_accessed=(S * B * H * enc_itemsize + ts * B * H * 4
                        + H * H * enc_itemsize + B * S * 4 + B * H * 4),
    )

    try:
        scores = _scores_pass(enc2d, hid_tiled, w1e, w2_row, B, S, H, ts,
                              vmem_limit, cost, single_buffer_invariants=True)
    except Exception:
        # pl.Buffered(1) not supported on this jax/libtpu combo: fall back to the
        # default double-buffered pipeline for the grid-invariant operands.
        scores = _scores_pass(enc2d, hid_tiled, w1e, w2_row, B, S, H, ts,
                              vmem_limit, cost, single_buffer_invariants=False)

    # Pass 2: full-row softmax over the tiny (B, S) scores (exact, f32).
    tb = _choose_batch_tile(B, S)
    out = pl.pallas_call(
        _softmax_kernel,
        out_shape=jax.ShapeDtypeStruct((B, S), jnp.float32),
        grid_spec=pltpu.PrefetchScalarGridSpec(
            num_scalar_prefetch=0,
            grid=(pl.cdiv(B, tb),),
            in_specs=[pl.BlockSpec((tb, S), lambda b: (b, 0))],
            out_specs=pl.BlockSpec((tb, S), lambda b: (b, 0)),
        ),
        compiler_params=pltpu.CompilerParams(
            dimension_semantics=("parallel",),
        ),
    )(scores)
    return out


# ---------------------------------------------------------------------------
# Pure-JAX reference (mirrors the PyTorch module)
# ---------------------------------------------------------------------------
def _reference(hidden, encoder_outputs, w1, b1, w2):
    S = encoder_outputs.shape[0]
    hid_rep = jnp.broadcast_to(hidden, (S,) + hidden.shape[1:])        # (S, B, H)
    energy = jnp.concatenate([hid_rep, encoder_outputs], axis=2)        # (S, B, 2H)
    energy = jnp.tanh(jnp.einsum("sbi,hi->sbh", energy, w1,
                                 precision=jax.lax.Precision.HIGHEST) + b1)
    scores = jnp.einsum("sbh,oh->sbo", energy, w2,
                        precision=jax.lax.Precision.HIGHEST)[..., 0]    # (S, B)
    return jax.nn.softmax(scores.T, axis=1)                             # (B, S)


if __name__ == "__main__":
    def _run_case(name, H, B, S, compute_dtype=jnp.float32, max_seq_tile=None,
                  atol=1e-5, rtol=1e-5):
        key = jax.random.PRNGKey(0)
        k_hid, k_enc, k_w1, k_b1, k_w2 = jax.random.split(key, 5)
        hidden = jax.random.normal(k_hid, (1, B, H), dtype=jnp.float32)
        encoder_outputs = jax.random.normal(k_enc, (S, B, H), dtype=jnp.float32)
        # PyTorch-style uniform(-1/sqrt(fan_in), 1/sqrt(fan_in)) init.
        bound1 = 1.0 / jnp.sqrt(2.0 * H)
        w1 = jax.random.uniform(k_w1, (H, 2 * H), minval=-bound1, maxval=bound1,
                                dtype=jnp.float32)
        b1 = jax.random.uniform(k_b1, (H,), minval=-bound1, maxval=bound1,
                                dtype=jnp.float32)
        bound2 = 1.0 / jnp.sqrt(float(H))
        w2 = jax.random.uniform(k_w2, (1, H), minval=-bound2, maxval=bound2,
                                dtype=jnp.float32)

        out = jax.block_until_ready(
            attention_forward(hidden, encoder_outputs, w1, b1, w2,
                              compute_dtype=compute_dtype,
                              max_seq_tile=max_seq_tile))
        ref = _reference(hidden, encoder_outputs, w1, b1, w2)
        assert out.shape == (B, S), (name, out.shape)
        max_err = float(jnp.max(jnp.abs(out - ref)))
        assert jnp.allclose(out, ref, atol=atol, rtol=rtol), (name, max_err)

    # Primary small case matching the module's intended use (hidden_size=32).
    _run_case("base", H=32, B=2, S=8)
    # Exercises the tiled / masked-edge path: S not a multiple of 128, B not a
    # multiple of 8, sequence tile forced below S (cdiv grid, masked last block).
    _run_case("tiled", H=128, B=3, S=300, max_seq_tile=128, atol=2e-5, rtol=2e-5)
    # bf16 fast path: bf16 streamed tensor + W_e, f32 accumulation and epilogue.
    _run_case("bf16", H=128, B=3, S=300, compute_dtype=jnp.bfloat16,
              max_seq_tile=128, atol=3e-2, rtol=3e-2)

    print("KERNEL_OK")
</pallas_src>

<mosaic_0001>
module attributes {stable_mosaic.version = 11 : i64} {
  func.func @_scores_kernel(%arg0: i32, %arg1: memref<16x32xf32, #tpu.memory_space<vmem>>, %arg2: memref<16x32xf32, #tpu.memory_space<vmem>>, %arg3: memref<32x32xf32, #tpu.memory_space<vmem>>, %arg4: memref<1x32xf32, #tpu.memory_space<vmem>>, %arg5: memref<2x8xf32, #tpu.memory_space<vmem>>) attributes {dimension_semantics = [#tpu.dimension_semantics<parallel>], iteration_bounds = array<i64: 1>, scalar_prefetch = 0 : i64, scratch_operands = 0 : i64, tpu.core_type = #tpu.core_type<tc>, window_params = [{transform_indices = @transform_0, window_bounds = array<i64: 16, 32>}, {pipeline_mode = #tpu.pipeline_mode<synchronous>, transform_indices = @transform_1, window_bounds = array<i64: 16, 32>}, {pipeline_mode = #tpu.pipeline_mode<synchronous>, transform_indices = @transform_2, window_bounds = array<i64: 32, 32>}, {pipeline_mode = #tpu.pipeline_mode<synchronous>, transform_indices = @transform_3, window_bounds = array<i64: 1, 32>}, {transform_indices = @transform_4, window_bounds = array<i64: 2, 8>}]} {
    %c0 = arith.constant 0 : index
    %c0_0 = arith.constant 0 : index
    %0 = vector.load %arg1[%c0, %c0_0] : memref<16x32xf32, #tpu.memory_space<vmem>>, vector<16x32xf32>
    %c0_1 = arith.constant 0 : index
    %c0_2 = arith.constant 0 : index
    %1 = vector.load %arg3[%c0_1, %c0_2] : memref<32x32xf32, #tpu.memory_space<vmem>>, vector<32x32xf32>
    %cst = arith.constant dense<0.000000e+00> : vector<16x32xf32>
    %2 = tpu.matmul %0, %1, %cst {dimension_numbers = #tpu.dot_dimension_numbers<[1], [0], [0], [1], [0, 0, 1, 1], [], []>} : vector<16x32xf32>, vector<32x32xf32>, vector<16x32xf32> -> vector<16x32xf32>
    %c0_3 = arith.constant 0 : index
    %c0_4 = arith.constant 0 : index
    %3 = vector.load %arg2[%c0_3, %c0_4] : memref<16x32xf32, #tpu.memory_space<vmem>>, vector<16x32xf32>
    %4 = arith.addf %2, %3 : vector<16x32xf32>
    %5 = math.tanh %4 : vector<16x32xf32>
    %c0_5 = arith.constant 0 : index
    %c0_6 = arith.constant 0 : index
    %6 = vector.load %arg4[%c0_5, %c0_6] : memref<1x32xf32, #tpu.memory_space<vmem>>, vector<1x32xf32>
    %7 = vector.broadcast %6 : vector<1x32xf32> to vector<16x32xf32>
    %8 = arith.mulf %5, %7 : vector<16x32xf32>
    %cst_7 = arith.constant dense<0.000000e+00> : vector<16xf32>
    %9 = vector.multi_reduction <add>, %8, %cst_7 [1] : vector<16x32xf32> to vector<16xf32>
    %10 = vector.shape_cast %9 : vector<16xf32> to vector<16x1xf32>
    %11 = vector.shape_cast %10 : vector<16x1xf32> to vector<8x2xf32>
    %12 = tpu.transpose %11, [1, 0] : vector<8x2xf32> -> vector<2x8xf32>
    %c0_8 = arith.constant 0 : index
    %c0_9 = arith.constant 0 : index
    %13 = vector.load %arg5[%c0_8, %c0_9] : memref<2x8xf32, #tpu.memory_space<vmem>>, vector<2x8xf32>
    tpu.vector_store %arg5[%c0_8, %c0_9], %12 {strides = array<i32>} : memref<2x8xf32, #tpu.memory_space<vmem>>, vector<2x8xf32>,
    return
  }
  func.func @transform_0(%arg0: i32) -> (i32, i32) {
    %c0_i32 = arith.constant 0 : i32
    %c0_i32_0 = arith.constant 0 : i32
    return %arg0, %c0_i32 : i32, i32
  }
  func.func @transform_1(%arg0: i32) -> (i32, i32) {
    %c0_i32 = arith.constant 0 : i32
    %c0_i32_0 = arith.constant 0 : i32
    %c0_i32_1 = arith.constant 0 : i32
    return %c0_i32, %c0_i32_0 : i32, i32
  }
  func.func @transform_2(%arg0: i32) -> (i32, i32) {
    %c0_i32 = arith.constant 0 : i32
    %c0_i32_0 = arith.constant 0 : i32
    %c0_i32_1 = arith.constant 0 : i32
    return %c0_i32, %c0_i32_0 : i32, i32
  }
  func.func @transform_3(%arg0: i32) -> (i32, i32) {
    %c0_i32 = arith.constant 0 : i32
    %c0_i32_0 = arith.constant 0 : i32
    %c0_i32_1 = arith.constant 0 : i32
    return %c0_i32, %c0_i32_0 : i32, i32
  }
  func.func @transform_4(%arg0: i32) -> (i32, i32) {
    %c0_i32 = arith.constant 0 : i32
    %c0_i32_0 = arith.constant 0 : i32
    return %c0_i32, %arg0 : i32, i32
  }
}

module attributes {stable_mosaic.version = 11 : i64} {
  func.func @_scores_kernel(%arg0: i32, %arg1: memref<16x32xf32, #tpu.memory_space<vmem>>, %arg2: memref<16x32xf32, #tpu.memory_space<vmem>>, %arg3: memref<32x32xf32, #tpu.memory_space<vmem>>, %arg4: memref<1x32xf32, #tpu.memory_space<vmem>>, %arg5: memref<2x8xf32, #tpu.memory_space<vmem>>) attributes {dimension_semantics = [#tpu.dimension_semantics<parallel>], iteration_bounds = array<i64: 1>, scalar_prefetch = 0 : i64, scratch_operands = 0 : i64, tpu.core_type = #tpu.core_type<tc>, window_params = [{transform_indices = @transform_0, window_bounds = array<i64: 16, 32>}, {pipeline_mode = #tpu.pipeline_mode<synchronous>, transform_indices = @transform_1, window_bounds = array<i64: 16, 32>}, {pipeline_mode = #tpu.pipeline_mode<synchronous>, transform_indices = @transform_2, window_bounds = array<i64: 32, 32>}, {pipeline_mode = #tpu.pipeline_mode<synchronous>, transform_indices = @transform_3, window_bounds = array<i64: 1, 32>}, {transform_indices = @transform_4, window_bounds = array<i64: 2, 8>}]} {
    %c0 = arith.constant 0 : index
    %c0_0 = arith.constant 0 : index
    %0 = vector.load %arg1[%c0, %c0_0] : memref<16x32xf32, #tpu.memory_space<vmem>>, vector<16x32xf32>
    %c0_1 = arith.constant 0 : index
    %c0_2 = arith.constant 0 : index
    %1 = vector.load %arg3[%c0_1, %c0_2] : memref<32x32xf32, #tpu.memory_space<vmem>>, vector<32x32xf32>
    %cst = arith.constant dense<0.000000e+00> : vector<16x32xf32>
    %2 = tpu.matmul %0, %1, %cst {dimension_numbers = #tpu.dot_dimension_numbers<[1], [0], [0], [1], [0, 0, 1, 1], [], []>} : vector<16x32xf32>, vector<32x32xf32>, vector<16x32xf32> -> vector<16x32xf32>
    %c0_3 = arith.constant 0 : index
    %c0_4 = arith.constant 0 : index
    %3 = vector.load %arg2[%c0_3, %c0_4] : memref<16x32xf32, #tpu.memory_space<vmem>>, vector<16x32xf32>
    %4 = arith.addf %2, %3 : vector<16x32xf32>
    %5 = math.tanh %4 : vector<16x32xf32>
    %c0_5 = arith.constant 0 : index
    %c0_6 = arith.constant 0 : index
    %6 = vector.load %arg4[%c0_5, %c0_6] : memref<1x32xf32, #tpu.memory_space<vmem>>, vector<1x32xf32>
    %7 = vector.broadcast %6 : vector<1x32xf32> to vector<16x32xf32>
    %8 = arith.mulf %5, %7 : vector<16x32xf32>
    %cst_7 = arith.constant dense<0.000000e+00> : vector<16xf32>
    %9 = vector.multi_reduction <add>, %8, %cst_7 [1] : vector<16x32xf32> to vector<16xf32>
    %10 = vector.shape_cast %9 : vector<16xf32> to vector<16x1xf32>
    %11 = vector.shape_cast %10 : vector<16x1xf32> to vector<8x2xf32>
    %12 = tpu.transpose %11, [1, 0] : vector<8x2xf32> -> vector<2x8xf32>
    %c0_8 = arith.constant 0 : index
    %c0_9 = arith.constant 0 : index
    %13 = vector.load %arg5[%c0_8, %c0_9] : memref<2x8xf32, #tpu.memory_space<vmem>>, vector<2x8xf32>
    tpu.vector_store %arg5[%c0_8, %c0_9], %12 {strides = array<i32>} : memref<2x8xf32, #tpu.memory_space<vmem>>, vector<2x8xf32>,
    return
  }
  func.func @transform_0(%arg0: i32) -> (i32, i32) {
    %c0_i32 = arith.constant 0 : i32
    %c0_i32_0 = arith.constant 0 : i32
    return %arg0, %c0_i32 : i32, i32
  }
  func.func @transform_1(%arg0: i32) -> (i32, i32) {
    %c0_i32 = arith.constant 0 : i32
    %c0_i32_0 = arith.constant 0 : i32
    %c0_i32_1 = arith.constant 0 : i32
    return %c0_i32, %c0_i32_0 : i32, i32
  }
  func.func @transform_2(%arg0: i32) -> (i32, i32) {
    %c0_i32 = arith.constant 0 : i32
    %c0_i32_0 = arith.constant 0 : i32
    %c0_i32_1 = arith.constant 0 : i32
    return %c0_i32, %c0_i32_0 : i32, i32
  }
  func.func @transform_3(%arg0: i32) -> (i32, i32) {
    %c0_i32 = arith.constant 0 : i32
    %c0_i32_0 = arith.constant 0 : i32
    %c0_i32_1 = arith.constant 0 : i32
    return %c0_i32, %c0_i32_0 : i32, i32
  }
  func.func @transform_4(%arg0: i32) -> (i32, i32) {
    %c0_i32 = arith.constant 0 : i32
    %c0_i32_0 = arith.constant 0 : i32
    return %c0_i32, %arg0 : i32, i32
  }
}

</mosaic_0001>

<llo_original>
// kernel: tpu_custom_call.1
$region0: #{tpu_custom_call.1}
  #allocation0 [shape = 'u32[]', space=smem, size = 0x4, offset = 0x4, fixed_abs, tag = 'smem constant byte address 0x4 - core index']
  #allocation1 [shape = 'u32[72,128]{1,0:T(1,128)}', space=vmem, size = 0x9000, scoped, tag = 'internal scratch']
  %s0 = inlined_call_operand.hbm [shape: f32[16,32], index: 0, kind: input, shape index: {}]
  %s1 = inlined_call_operand.hbm [shape: f32[16,32], index: 1, kind: input, shape index: {}]
  %s2 = inlined_call_operand.hbm [shape: f32[32,32], index: 2, kind: input, shape index: {}]
  %s3 = inlined_call_operand.vmem [shape: f32[1,32], index: 3, kind: input, shape index: {}]
  %s4 = inlined_call_operand.hbm [shape: f32[2,8], index: 4, kind: output, shape index: {}]
  %s5 = sld [smem:[#allocation0]]
  $region38: #{tpu_custom_call.1} parent=0
    _
  %s7 = ssub.s32 1, %s5
  %s8 = scalar_select 0, %s7, %s5
  $region1: #{tpu_custom_call.1} parent=0
    #allocation2 [shape = 'u8[8192]{0}', space=vmem, size = 0x2000, scoped, tag = 'input window, operand 0, single buffered']
    #allocation3 [shape = 's32[1]{0}', space=sflag, size = 0x4, scoped, tag = 'scoped memory for tpu_custom_call.1']
    #allocation4 [shape = 's32[1]{0}', space=sflag, size = 0x4, scoped, tag = 'scoped memory for tpu_custom_call.1']
    #allocation5 [shape = 'u8[8192]{0}', space=vmem, size = 0x2000, scoped, tag = 'input window, operand 1, single buffered']
    #allocation6 [shape = 's32[1]{0}', space=sflag, size = 0x4, scoped, tag = 'scoped memory for tpu_custom_call.1']
    #allocation7 [shape = 'u8[16384]{0}', space=vmem, size = 0x4000, scoped, tag = 'input window, operand 2, single buffered']
    #allocation8 [shape = 'u8[1024]{0}', space=vmem, size = 0x400, scoped, tag = 'output window, operand 0, single buffered']
    %9 = vsyncpa [#allocation3], 0
    %10 = vsyncpa [#allocation6], 0
    %11 = vsyncpa [#allocation4], 0
    // Predicated region
    $region2: #{tpu_custom_call.1} parent=1 // pred_check
      _
    $region3: #{tpu_custom_call.1} parent=1 // pred_check_branch
      %13 = sbr.rel (0) target = $region5
    $region4: #{tpu_custom_call.1} parent=1 // pred_region
      %15 = vsyncadd [#allocation3], 0
      %s16 = sshll.u32 %s0, 4
      %s17 = int_to_ptr.hbm [resolvable:$true] %s16
      %s18 = sshll.u32 [#allocation2], 4
      %s19 = int_to_ptr.vmem [resolvable:$true] %s18
      %24 = dma.hbm_to_vmem [thread:$0]  %s17, 256, %s19, [#allocation3], 128, 128, 8
    $region5: #{tpu_custom_call.1} parent=1 // pred_fallthru
      _
    // Predicated region
    $region6: #{tpu_custom_call.1} parent=1 // pred_check
      _
    $region7: #{tpu_custom_call.1} parent=1 // pred_check_branch
      %26 = sbr.rel (0) target = $region9
    $region8: #{tpu_custom_call.1} parent=1 // pred_region
      %28 = vsyncadd [#allocation6], 0
      %s29 = sshll.u32 %s1, 4
      %s30 = int_to_ptr.hbm [resolvable:$true] %s29
      %s31 = sshll.u32 [#allocation5], 4
      %s32 = int_to_ptr.vmem [resolvable:$true] %s31
      %37 = dma.hbm_to_vmem [thread:$0]  %s30, 256, %s32, [#allocation6], 128, 128, 8
    $region9: #{tpu_custom_call.1} parent=1 // pred_fallthru
      _
    // Predicated region
    $region10: #{tpu_custom_call.1} parent=1 // pred_check
      _
    $region11: #{tpu_custom_call.1} parent=1 // pred_check_branch
      %39 = sbr.rel (0) target = $region13
    $region12: #{tpu_custom_call.1} parent=1 // pred_region
      %41 = vsyncadd [#allocation6], 0
      %s42 = sshll.u32 %s2, 4
      %s43 = int_to_ptr.hbm [resolvable:$true] %s42
      %s44 = sshll.u32 [#allocation7], 4
      %s45 = int_to_ptr.vmem [resolvable:$true] %s44
      %50 = dma.hbm_to_vmem [thread:$0]  %s43, 512, %s45, [#allocation6], 128, 128, 8
    $region13: #{tpu_custom_call.1} parent=1 // pred_fallthru
      _
    // Predicated region
    $region14: #{tpu_custom_call.1} parent=1 // pred_check
      _
    $region15: #{tpu_custom_call.1} parent=1 // pred_check_branch
      %52 = sbr.rel (0) target = $region17
    $region16: #{tpu_custom_call.1} parent=1 // pred_region
      _
    $region17: #{tpu_custom_call.1} parent=1 // pred_fallthru
      _
    // Predicated region
    $region18: #{tpu_custom_call.1} parent=1 // pred_check
      _
    $region19: #{tpu_custom_call.1} parent=1 // pred_check_branch
      %54 = sbr.rel (0) target = $region21
    $region20: #{tpu_custom_call.1} parent=1 // pred_region
      %56 = dma.done [#allocation3], 256
    $region21: #{tpu_custom_call.1} parent=1 // pred_fallthru
      _
    // Predicated region
    $region22: #{tpu_custom_call.1} parent=1 // pred_check
      _
    $region23: #{tpu_custom_call.1} parent=1 // pred_check_branch
      %58 = sbr.rel (0) target = $region25
    $region24: #{tpu_custom_call.1} parent=1 // pred_region
      %60 = dma.done [#allocation6], 256
    $region25: #{tpu_custom_call.1} parent=1 // pred_fallthru
      _
    // Predicated region
    $region26: #{tpu_custom_call.1} parent=1 // pred_check
      _
    $region27: #{tpu_custom_call.1} parent=1 // pred_check_branch
      %62 = sbr.rel (0) target = $region29
    $region28: #{tpu_custom_call.1} parent=1 // pred_region
      %64 = dma.done [#allocation6], 512
    $region29: #{tpu_custom_call.1} parent=1 // pred_fallthru
      _
    %v65 = vld [vmem:[#allocation2] sm:$0xff]
    %v66 = vld [vmem:[#allocation2 + $0x8] sm:$0xff]
    %v67 = vld [vmem:[#allocation7] sm:$0xff]
    %v68 = vld [vmem:[#allocation7 + $0x8] sm:$0xff]
    %v69 = vld [vmem:[#allocation7 + $0x10] sm:$0xff]
    %v70 = vld [vmem:[#allocation7 + $0x18] sm:$0xff]
    %v71 = vld [vmem:[#allocation5] sm:$0xff]
    %v72 = vld [vmem:[#allocation5 + $0x8] sm:$0xff]
    %vm73 = vcmask 261120
    %v75 = vsel %vm73, %v65, 0
    %v78 = vsel %vm73, %v66, 0
    %80 = vmatpush.msra.mxu0 0.0
    %81 = vmatpush.msra.mxu0 0.0
    %82 = vmatpush.msra.mxu0 0.0
    %83 = vmatpush.msra.mxu0 0.0
    %84 = vmatpush.msra.mxu0 0.0
    %85 = vmatpush.msra.mxu0 0.0
    %86 = vmatpush.msra.mxu0 0.0
    %87 = vmatpush.msra.mxu0 0.0
    %88 = vmatpush.msra.mxu0 0.0
    %89 = vmatpush.msra.mxu0 0.0
    %90 = vmatpush.msra.mxu0 0.0
    %91 = vmatpush.msra.mxu0 0.0
    %92 = vmatpush.msra.mxu0 %v70
    %93 = vmatpush.msra.mxu0 %v69
    %94 = vmatpush.msra.mxu0 %v68
    %95 = vmatpush.msra.mxu0 %v67
    %96 = vmatmul.f32.gmra.mxu0 %v75
    %v97 = vpop.f32.mrf.mxu0
    %v98 = vadd.f32 %v71, %v97
    %99 = vmatmul.f32.gmra.mxu0 %v78
    %v100 = vpop.f32.mrf.mxu0
    %v101 = vadd.f32 %v72, %v100
    %102 = vdwg.mxu0
    %v103 = vtanh.pop %v98
    %v104 = vtanh.pop %v101
    %v105 = vld [vmem:[%s3] sm:$0x1]
    %v107 = vperm.slane %v105, 0
    %v109 = vmul.f32 %v103, %v107
    %v110 = vmul.f32 %v104, %v107
    %v111 = vsel %vm73, %v109, 0.0
    %112 = vadd.xlane.f32.xlu0 %v111
    %v113 = vpop.xlane.xlu0 %112
    %v114 = vsel %vm73, %v110, 0.0
    %115 = vadd.xlane.f32.xlu0 %v114
    %v116 = vpop.xlane.xlu0 %115
    %v120 = vunpack.c.l.s4 269488144
    %v121 = vunpack.c.0.s8 %v120
    %v122 = vperm.slane %v113, %v121
    %v124 = vunpack.c.l.s4 842150450
    %v125 = vunpack.c.0.s8 %v124
    %v126 = vperm.slane %v113, %v125
    %v128 = vunpack.c.l.s4 1414812756
    %v129 = vunpack.c.0.s8 %v128
    %v130 = vperm.slane %v113, %v129
    %v132 = vunpack.c.l.s4 1987475062
    %v133 = vunpack.c.0.s8 %v132
    %v134 = vperm.slane %v113, %v133
    %v136 = vunpack.c.l.s4 269488144
    %v137 = vunpack.c.0.s8 %v136
    %v138 = vperm.slane %v116, %v137
    %v140 = vunpack.c.l.s4 842150450
    %v141 = vunpack.c.0.s8 %v140
    %v142 = vperm.slane %v116, %v141
    %v144 = vunpack.c.l.s4 1414812756
    %v145 = vunpack.c.0.s8 %v144
    %v146 = vperm.slane %v116, %v145
    %v148 = vunpack.c.l.s4 1987475062
    %v149 = vunpack.c.0.s8 %v148
    %v150 = vperm.slane %v116, %v149
    %151 = vst [vmem:[#allocation1] ss:$4 sm:$0xff] %v122
    %v152 = vld.sshfl [vmem:[#allocation1] sm:$0xff pattern:$0x73625140]
    %s153 = scalar_lea.vmem [#allocation1], 32
    %154 = vst [vmem:[%s153] ss:$4 sm:$0xff] %v126
    %v155 = vld.sshfl [vmem:[#allocation1 + $0x20] sm:$0xff pattern:$0x73625140]
    %156 = vst [vmem:[#allocation1] ss:$4 sm:$0xff] %v130
    %v157 = vld.sshfl [vmem:[#allocation1] sm:$0xff pattern:$0x73625140]
    %158 = vst [vmem:[%s153] ss:$4 sm:$0xff] %v134
    %v159 = vld.sshfl [vmem:[#allocation1 + $0x20] sm:$0xff pattern:$0x73625140]
    %160 = vst [vmem:[#allocation1] ss:$4 sm:$0xff] %v138
    %v161 = vld.sshfl [vmem:[#allocation1] sm:$0xff pattern:$0x73625140]
    %162 = vst [vmem:[%s153] ss:$4 sm:$0xff] %v142
    %v163 = vld.sshfl [vmem:[#allocation1 + $0x20] sm:$0xff pattern:$0x73625140]
    %164 = vst [vmem:[#allocation1] ss:$4 sm:$0xff] %v146
    %v165 = vld.sshfl [vmem:[#allocation1] sm:$0xff pattern:$0x73625140]
    %166 = vst [vmem:[%s153] ss:$4 sm:$0xff] %v150
    %v167 = vld.sshfl [vmem:[#allocation1 + $0x20] sm:$0xff pattern:$0x73625140]
    %168 = vset.pattern.permute.xlu0 0
    %169 = vperm.xlu0 %168, %v152
    %v170 = vpop.permute.xlu0 %169
    %171 = vset.pattern.permute.xlu0 0
    %172 = vperm.xlu0 %171, %v155
    %v173 = vpop.permute.xlu0 %172
    %174 = vset.pattern.permute.xlu0 0
    %175 = vperm.xlu0 %174, %v157
    %v176 = vpop.permute.xlu0 %175
    %177 = vset.pattern.permute.xlu0 0
    %178 = vperm.xlu0 %177, %v159
    %v179 = vpop.permute.xlu0 %178
    %180 = vset.pattern.permute.xlu0 0
    %181 = vperm.xlu0 %180, %v161
    %v182 = vpop.permute.xlu0 %181
    %183 = vset.pattern.permute.xlu0 0
    %184 = vperm.xlu0 %183, %v163
    %v185 = vpop.permute.xlu0 %184
    %186 = vset.pattern.permute.xlu0 0
    %187 = vperm.xlu0 %186, %v165
    %v188 = vpop.permute.xlu0 %187
    %189 = vset.pattern.permute.xlu0 0
    %190 = vperm.xlu0 %189, %v167
    %v191 = vpop.permute.xlu0 %190
    %v192 = vlaneseq
    %v193 = vand.u32 %v192, 127
    %v194 = vperm.slane %v170, %v193
    %v195 = vperm.slane %v173, %v193
    %v196 = vperm.slane %v176, %v193
    %v197 = vperm.slane %v179, %v193
    %v198 = vperm.slane %v182, %v193
    %v199 = vperm.slane %v185, %v193
    %v200 = vperm.slane %v188, %v193
    %v201 = vperm.slane %v191, %v193
    %vm202 = vcmask 1041409
    %v203 = vsel %vm202, %v195, %v194
    %vm204 = vcmask 1042434
    %v205 = vsel %vm204, %v196, %v203
    %vm206 = vcmask 1043459
    %v207 = vsel %vm206, %v197, %v205
    %vm208 = vcmask 1044484
    %v209 = vsel %vm208, %v198, %v207
    %vm210 = vcmask 1045509
    %v211 = vsel %vm210, %v199, %v209
    %vm212 = vcmask 1046534
    %v213 = vsel %vm212, %v200, %v211
    %vm214 = vcmask 1047559
    %v215 = vsel %vm214, %v201, %v213
    %217 = vxpose.xlu0.b32.start [1/16] %v215, 128
    %218 = vxpose.xlu0.b32.cont [2/16] 0.0, 128
    %219 = vxpose.xlu0.b32.cont [3/16] 0.0, 128
    %220 = vxpose.xlu0.b32.cont [4/16] 0.0, 128
    %221 = vxpose.xlu0.b32.cont [5/16] 0.0, 128
    %222 = vxpose.xlu0.b32.cont [6/16] 0.0, 128
    %223 = vxpose.xlu0.b32.cont [7/16] 0.0, 128
    %224 = vxpose.xlu0.b32.cont [8/16] 0.0, 128
    %225 = vxpose.xlu0.b32.cont [9/16] 0.0, 128
    %226 = vxpose.xlu0.b32.cont [10/16] 0.0, 128
    %227 = vxpose.xlu0.b32.cont [11/16] 0.0, 128
    %228 = vxpose.xlu0.b32.cont [12/16] 0.0, 128
    %229 = vxpose.xlu0.b32.cont [13/16] 0.0, 128
    %230 = vxpose.xlu0.b32.cont [14/16] 0.0, 128
    %231 = vxpose.xlu0.b32.cont [15/16] 0.0, 128
    %232 = vxpose.xlu0.b32.end [16/16] 0.0, 128
    %v233 = vpop.trf.xlu0
    %v234 = vpop.trf.xlu0
    %v235 = vpop.trf.xlu0
    %v236 = vpop.trf.xlu0
    %v237 = vpop.trf.xlu0
    %v238 = vpop.trf.xlu0
    %v239 = vpop.trf.xlu0
    %v240 = vpop.trf.xlu0
    %v241 = vpop.trf.xlu0
    %v242 = vpop.trf.xlu0
    %v243 = vpop.trf.xlu0
    %v244 = vpop.trf.xlu0
    %v245 = vpop.trf.xlu0
    %v246 = vpop.trf.xlu0
    %v247 = vpop.trf.xlu0
    %v248 = vpop.trf.xlu0
    %vm249 = vcmask 58368
    %250 = vst.msk [vmem:[#allocation8] sm:$0x3] %vm249, %v233
    // Predicated region
    $region30: #{tpu_custom_call.1} parent=1 // pred_check
      _
    $region31: #{tpu_custom_call.1} parent=1 // pred_check_branch
      %252 = sbr.rel (0) target = $region33
    $region32: #{tpu_custom_call.1} parent=1 // pred_region
      %254 = vsyncadd [#allocation4], 0
      %s256 = sshll.u32 [#allocation8], 4
      %s257 = int_to_ptr.vmem [resolvable:$true] %s256
      %s258 = sshll.u32 %s4, 4
      %s259 = int_to_ptr.hbm [resolvable:$true] %s258
      %261 = dma.vmem_to_hbm [thread:$0]  %s257, 32, %s259, [#allocation4]
    $region33: #{tpu_custom_call.1} parent=1 // pred_fallthru
      _
    // Predicated region
    $region34: #{tpu_custom_call.1} parent=1 // pred_check
      _
    $region35: #{tpu_custom_call.1} parent=1 // pred_check_branch
      %263 = sbr.rel (0) target = $region37
    $region36: #{tpu_custom_call.1} parent=1 // pred_region
      %265 = dma.done [#allocation4], 32
    $region37: #{tpu_custom_call.1} parent=1 // pred_fallthru
      _
    %266 = vsyncpa [#allocation3], 1
    %267 = vsyncpa [#allocation6], 1
    %268 = vsyncpa [#allocation4], 1

// kernel: tpu_custom_call.1
$region0: #{tpu_custom_call.1}
  #allocation0 [shape = 'u32[]', space=smem, size = 0x4, offset = 0x4, fixed_abs, tag = 'smem constant byte address 0x4 - core index']
  #allocation1 [shape = 'u32[72,128]{1,0:T(1,128)}', space=vmem, size = 0x9000, scoped, tag = 'internal scratch']
  %s0 = inlined_call_operand.hbm [shape: f32[16,32], index: 0, kind: input, shape index: {}]
  %s1 = inlined_call_operand.hbm [shape: f32[16,32], index: 1, kind: input, shape index: {}]
  %s2 = inlined_call_operand.hbm [shape: f32[32,32], index: 2, kind: input, shape index: {}]
  %s3 = inlined_call_operand.vmem [shape: f32[1,32], index: 3, kind: input, shape index: {}]
  %s4 = inlined_call_operand.hbm [shape: f32[2,8], index: 4, kind: output, shape index: {}]
  %s5 = sld [smem:[#allocation0]]
  $region38: #{tpu_custom_call.1} parent=0
    _
  %s7 = ssub.s32 1, %s5
  %s8 = scalar_select 0, %s7, %s5
  $region1: #{tpu_custom_call.1} parent=0
    #allocation2 [shape = 'u8[8192]{0}', space=vmem, size = 0x2000, scoped, tag = 'input window, operand 0, single buffered']
    #allocation3 [shape = 's32[1]{0}', space=sflag, size = 0x4, scoped, tag = 'scoped memory for tpu_custom_call.1']
    #allocation4 [shape = 's32[1]{0}', space=sflag, size = 0x4, scoped, tag = 'scoped memory for tpu_custom_call.1']
    #allocation5 [shape = 'u8[8192]{0}', space=vmem, size = 0x2000, scoped, tag = 'input window, operand 1, single buffered']
    #allocation6 [shape = 's32[1]{0}', space=sflag, size = 0x4, scoped, tag = 'scoped memory for tpu_custom_call.1']
    #allocation7 [shape = 'u8[16384]{0}', space=vmem, size = 0x4000, scoped, tag = 'input window, operand 2, single buffered']
    #allocation8 [shape = 'u8[1024]{0}', space=vmem, size = 0x400, scoped, tag = 'output window, operand 0, single buffered']
    %9 = vsyncpa [#allocation3], 0
    %10 = vsyncpa [#allocation6], 0
    %11 = vsyncpa [#allocation4], 0
    // Predicated region
    $region2: #{tpu_custom_call.1} parent=1 // pred_check
      _
    $region3: #{tpu_custom_call.1} parent=1 // pred_check_branch
      %13 = sbr.rel (0) target = $region5
    $region4: #{tpu_custom_call.1} parent=1 // pred_region
      %15 = vsyncadd [#allocation3], 0
      %s16 = sshll.u32 %s0, 4
      %s17 = int_to_ptr.hbm [resolvable:$true] %s16
      %s18 = sshll.u32 [#allocation2], 4
      %s19 = int_to_ptr.vmem [resolvable:$true] %s18
      %24 = dma.hbm_to_vmem [thread:$0]  %s17, 256, %s19, [#allocation3], 128, 128, 8
    $region5: #{tpu_custom_call.1} parent=1 // pred_fallthru
      _
    // Predicated region
    $region6: #{tpu_custom_call.1} parent=1 // pred_check
      _
    $region7: #{tpu_custom_call.1} parent=1 // pred_check_branch
      %26 = sbr.rel (0) target = $region9
    $region8: #{tpu_custom_call.1} parent=1 // pred_region
      %28 = vsyncadd [#allocation6], 0
      %s29 = sshll.u32 %s1, 4
      %s30 = int_to_ptr.hbm [resolvable:$true] %s29
      %s31 = sshll.u32 [#allocation5], 4
      %s32 = int_to_ptr.vmem [resolvable:$true] %s31
      %37 = dma.hbm_to_vmem [thread:$0]  %s30, 256, %s32, [#allocation6], 128, 128, 8
    $region9: #{tpu_custom_call.1} parent=1 // pred_fallthru
      _
    // Predicated region
    $region10: #{tpu_custom_call.1} parent=1 // pred_check
      _
    $region11: #{tpu_custom_call.1} parent=1 // pred_check_branch
      %39 = sbr.rel (0) target = $region13
    $region12: #{tpu_custom_call.1} parent=1 // pred_region
      %41 = vsyncadd [#allocation6], 0
      %s42 = sshll.u32 %s2, 4
      %s43 = int_to_ptr.hbm [resolvable:$true] %s42
      %s44 = sshll.u32 [#allocation7], 4
      %s45 = int_to_ptr.vmem [resolvable:$true] %s44
      %50 = dma.hbm_to_vmem [thread:$0]  %s43, 512, %s45, [#allocation6], 128, 128, 8
    $region13: #{tpu_custom_call.1} parent=1 // pred_fallthru
      _
    // Predicated region
    $region14: #{tpu_custom_call.1} parent=1 // pred_check
      _
    $region15: #{tpu_custom_call.1} parent=1 // pred_check_branch
      %52 = sbr.rel (0) target = $region17
    $region16: #{tpu_custom_call.1} parent=1 // pred_region
      _
    $region17: #{tpu_custom_call.1} parent=1 // pred_fallthru
      _
    // Predicated region
    $region18: #{tpu_custom_call.1} parent=1 // pred_check
      _
    $region19: #{tpu_custom_call.1} parent=1 // pred_check_branch
      %54 = sbr.rel (0) target = $region21
    $region20: #{tpu_custom_call.1} parent=1 // pred_region
      %56 = dma.done [#allocation3], 256
    $region21: #{tpu_custom_call.1} parent=1 // pred_fallthru
      _
    // Predicated region
    $region22: #{tpu_custom_call.1} parent=1 // pred_check
      _
    $region23: #{tpu_custom_call.1} parent=1 // pred_check_branch
      %58 = sbr.rel (0) target = $region25
    $region24: #{tpu_custom_call.1} parent=1 // pred_region
      %60 = dma.done [#allocation6], 256
    $region25: #{tpu_custom_call.1} parent=1 // pred_fallthru
      _
    // Predicated region
    $region26: #{tpu_custom_call.1} parent=1 // pred_check
      _
    $region27: #{tpu_custom_call.1} parent=1 // pred_check_branch
      %62 = sbr.rel (0) target = $region29
    $region28: #{tpu_custom_call.1} parent=1 // pred_region
      %64 = dma.done [#allocation6], 512
    $region29: #{tpu_custom_call.1} parent=1 // pred_fallthru
      _
    %v65 = vld [vmem:[#allocation2] sm:$0xff]
    %v66 = vld [vmem:[#allocation2 + $0x8] sm:$0xff]
    %v67 = vld [vmem:[#allocation7] sm:$0xff]
    %v68 = vld [vmem:[#allocation7 + $0x8] sm:$0xff]
    %v69 = vld [vmem:[#allocation7 + $0x10] sm:$0xff]
    %v70 = vld [vmem:[#allocation7 + $0x18] sm:$0xff]
    %v71 = vld [vmem:[#allocation5] sm:$0xff]
    %v72 = vld [vmem:[#allocation5 + $0x8] sm:$0xff]
    %vm73 = vcmask 261120
    %v75 = vsel %vm73, %v65, 0
    %v78 = vsel %vm73, %v66, 0
    %80 = vmatpush.msra.mxu0 0.0
    %81 = vmatpush.msra.mxu0 0.0
    %82 = vmatpush.msra.mxu0 0.0
    %83 = vmatpush.msra.mxu0 0.0
    %84 = vmatpush.msra.mxu0 0.0
    %85 = vmatpush.msra.mxu0 0.0
    %86 = vmatpush.msra.mxu0 0.0
    %87 = vmatpush.msra.mxu0 0.0
    %88 = vmatpush.msra.mxu0 0.0
    %89 = vmatpush.msra.mxu0 0.0
    %90 = vmatpush.msra.mxu0 0.0
    %91 = vmatpush.msra.mxu0 0.0
    %92 = vmatpush.msra.mxu0 %v70
    %93 = vmatpush.msra.mxu0 %v69
    %94 = vmatpush.msra.mxu0 %v68
    %95 = vmatpush.msra.mxu0 %v67
    %96 = vmatmul.f32.gmra.mxu0 %v75
    %v97 = vpop.f32.mrf.mxu0
    %v98 = vadd.f32 %v71, %v97
    %99 = vmatmul.f32.gmra.mxu0 %v78
    %v100 = vpop.f32.mrf.mxu0
    %v101 = vadd.f32 %v72, %v100
    %102 = vdwg.mxu0
    %v103 = vtanh.pop %v98
    %v104 = vtanh.pop %v101
    %v105 = vld [vmem:[%s3] sm:$0x1]
    %v107 = vperm.slane %v105, 0
    %v109 = vmul.f32 %v103, %v107
    %v110 = vmul.f32 %v104, %v107
    %v111 = vsel %vm73, %v109, 0.0
    %112 = vadd.xlane.f32.xlu0 %v111
    %v113 = vpop.xlane.xlu0 %112
    %v114 = vsel %vm73, %v110, 0.0
    %115 = vadd.xlane.f32.xlu0 %v114
    %v116 = vpop.xlane.xlu0 %115
    %v120 = vunpack.c.l.s4 269488144
    %v121 = vunpack.c.0.s8 %v120
    %v122 = vperm.slane %v113, %v121
    %v124 = vunpack.c.l.s4 842150450
    %v125 = vunpack.c.0.s8 %v124
    %v126 = vperm.slane %v113, %v125
    %v128 = vunpack.c.l.s4 1414812756
    %v129 = vunpack.c.0.s8 %v128
    %v130 = vperm.slane %v113, %v129
    %v132 = vunpack.c.l.s4 1987475062
    %v133 = vunpack.c.0.s8 %v132
    %v134 = vperm.slane %v113, %v133
    %v136 = vunpack.c.l.s4 269488144
    %v137 = vunpack.c.0.s8 %v136
    %v138 = vperm.slane %v116, %v137
    %v140 = vunpack.c.l.s4 842150450
    %v141 = vunpack.c.0.s8 %v140
    %v142 = vperm.slane %v116, %v141
    %v144 = vunpack.c.l.s4 1414812756
    %v145 = vunpack.c.0.s8 %v144
    %v146 = vperm.slane %v116, %v145
    %v148 = vunpack.c.l.s4 1987475062
    %v149 = vunpack.c.0.s8 %v148
    %v150 = vperm.slane %v116, %v149
    %151 = vst [vmem:[#allocation1] ss:$4 sm:$0xff] %v122
    %v152 = vld.sshfl [vmem:[#allocation1] sm:$0xff pattern:$0x73625140]
    %s153 = scalar_lea.vmem [#allocation1], 32
    %154 = vst [vmem:[%s153] ss:$4 sm:$0xff] %v126
    %v155 = vld.sshfl [vmem:[#allocation1 + $0x20] sm:$0xff pattern:$0x73625140]
    %156 = vst [vmem:[#allocation1] ss:$4 sm:$0xff] %v130
    %v157 = vld.sshfl [vmem:[#allocation1] sm:$0xff pattern:$0x73625140]
    %158 = vst [vmem:[%s153] ss:$4 sm:$0xff] %v134
    %v159 = vld.sshfl [vmem:[#allocation1 + $0x20] sm:$0xff pattern:$0x73625140]
    %160 = vst [vmem:[#allocation1] ss:$4 sm:$0xff] %v138
    %v161 = vld.sshfl [vmem:[#allocation1] sm:$0xff pattern:$0x73625140]
    %162 = vst [vmem:[%s153] ss:$4 sm:$0xff] %v142
    %v163 = vld.sshfl [vmem:[#allocation1 + $0x20] sm:$0xff pattern:$0x73625140]
    %164 = vst [vmem:[#allocation1] ss:$4 sm:$0xff] %v146
    %v165 = vld.sshfl [vmem:[#allocation1] sm:$0xff pattern:$0x73625140]
    %166 = vst [vmem:[%s153] ss:$4 sm:$0xff] %v150
    %v167 = vld.sshfl [vmem:[#allocation1 + $0x20] sm:$0xff pattern:$0x73625140]
    %168 = vset.pattern.permute.xlu0 0
    %169 = vperm.xlu0 %168, %v152
    %v170 = vpop.permute.xlu0 %169
    %171 = vset.pattern.permute.xlu0 0
    %172 = vperm.xlu0 %171, %v155
    %v173 = vpop.permute.xlu0 %172
    %174 = vset.pattern.permute.xlu0 0
    %175 = vperm.xlu0 %174, %v157
    %v176 = vpop.permute.xlu0 %175
    %177 = vset.pattern.permute.xlu0 0
    %178 = vperm.xlu0 %177, %v159
    %v179 = vpop.permute.xlu0 %178
    %180 = vset.pattern.permute.xlu0 0
    %181 = vperm.xlu0 %180, %v161
    %v182 = vpop.permute.xlu0 %181
    %183 = vset.pattern.permute.xlu0 0
    %184 = vperm.xlu0 %183, %v163
    %v185 = vpop.permute.xlu0 %184
    %186 = vset.pattern.permute.xlu0 0
    %187 = vperm.xlu0 %186, %v165
    %v188 = vpop.permute.xlu0 %187
    %189 = vset.pattern.permute.xlu0 0
    %190 = vperm.xlu0 %189, %v167
    %v191 = vpop.permute.xlu0 %190
    %v192 = vlaneseq
    %v193 = vand.u32 %v192, 127
    %v194 = vperm.slane %v170, %v193
    %v195 = vperm.slane %v173, %v193
    %v196 = vperm.slane %v176, %v193
    %v197 = vperm.slane %v179, %v193
    %v198 = vperm.slane %v182, %v193
    %v199 = vperm.slane %v185, %v193
    %v200 = vperm.slane %v188, %v193
    %v201 = vperm.slane %v191, %v193
    %vm202 = vcmask 1041409
    %v203 = vsel %vm202, %v195, %v194
    %vm204 = vcmask 1042434
    %v205 = vsel %vm204, %v196, %v203
    %vm206 = vcmask 1043459
    %v207 = vsel %vm206, %v197, %v205
    %vm208 = vcmask 1044484
    %v209 = vsel %vm208, %v198, %v207
    %vm210 = vcmask 1045509
    %v211 = vsel %vm210, %v199, %v209
    %vm212 = vcmask 1046534
    %v213 = vsel %vm212, %v200, %v211
    %vm214 = vcmask 1047559
    %v215 = vsel %vm214, %v201, %v213
    %217 = vxpose.xlu0.b32.start [1/16] %v215, 128
    %218 = vxpose.xlu0.b32.cont [2/16] 0.0, 128
    %219 = vxpose.xlu0.b32.cont [3/16] 0.0, 128
    %220 = vxpose.xlu0.b32.cont [4/16] 0.0, 128
    %221 = vxpose.xlu0.b32.cont [5/16] 0.0, 128
    %222 = vxpose.xlu0.b32.cont [6/16] 0.0, 128
    %223 = vxpose.xlu0.b32.cont [7/16] 0.0, 128
    %224 = vxpose.xlu0.b32.cont [8/16] 0.0, 128
    %225 = vxpose.xlu0.b32.cont [9/16] 0.0, 128
    %226 = vxpose.xlu0.b32.cont [10/16] 0.0, 128
    %227 = vxpose.xlu0.b32.cont [11/16] 0.0, 128
    %228 = vxpose.xlu0.b32.cont [12/16] 0.0, 128
    %229 = vxpose.xlu0.b32.cont [13/16] 0.0, 128
    %230 = vxpose.xlu0.b32.cont [14/16] 0.0, 128
    %231 = vxpose.xlu0.b32.cont [15/16] 0.0, 128
    %232 = vxpose.xlu0.b32.end [16/16] 0.0, 128
    %v233 = vpop.trf.xlu0
    %v234 = vpop.trf.xlu0
    %v235 = vpop.trf.xlu0
    %v236 = vpop.trf.xlu0
    %v237 = vpop.trf.xlu0
    %v238 = vpop.trf.xlu0
    %v239 = vpop.trf.xlu0
    %v240 = vpop.trf.xlu0
    %v241 = vpop.trf.xlu0
    %v242 = vpop.trf.xlu0
    %v243 = vpop.trf.xlu0
    %v244 = vpop.trf.xlu0
    %v245 = vpop.trf.xlu0
    %v246 = vpop.trf.xlu0
    %v247 = vpop.trf.xlu0
    %v248 = vpop.trf.xlu0
    %vm249 = vcmask 58368
    %250 = vst.msk [vmem:[#allocation8] sm:$0x3] %vm249, %v233
    // Predicated region
    $region30: #{tpu_custom_call.1} parent=1 // pred_check
      _
    $region31: #{tpu_custom_call.1} parent=1 // pred_check_branch
      %252 = sbr.rel (0) target = $region33
    $region32: #{tpu_custom_call.1} parent=1 // pred_region
      %254 = vsyncadd [#allocation4], 0
      %s256 = sshll.u32 [#allocation8], 4
      %s257 = int_to_ptr.vmem [resolvable:$true] %s256
      %s258 = sshll.u32 %s4, 4
      %s259 = int_to_ptr.hbm [resolvable:$true] %s258
      %261 = dma.vmem_to_hbm [thread:$0]  %s257, 32, %s259, [#allocation4]
    $region33: #{tpu_custom_call.1} parent=1 // pred_fallthru
      _
    // Predicated region
    $region34: #{tpu_custom_call.1} parent=1 // pred_check
      _
    $region35: #{tpu_custom_call.1} parent=1 // pred_check_branch
      %263 = sbr.rel (0) target = $region37
    $region36: #{tpu_custom_call.1} parent=1 // pred_region
      %265 = dma.done [#allocation4], 32
    $region37: #{tpu_custom_call.1} parent=1 // pred_fallthru
      _
    %266 = vsyncpa [#allocation3], 1
    %267 = vsyncpa [#allocation6], 1
    %268 = vsyncpa [#allocation4], 1

</llo_original>
